<compile_context>
chip_gen: v7x
topology: tpu7x:2x2x1
jax: 0.10.0
libtpu: 0.0.40
codegen_flags: <defaults>
</compile_context>

<pallas_src>
import jax
import jax.numpy as jnp
from jax.experimental import pallas as pl
from jax.experimental.pallas import tpu as pltpu


def _cls_encoder_kernel(x_ref, w1_ref, b1_ref, w2_ref, b2_ref, o_ref):
    """One grid step processes TB batch rows.

    x_ref  : VMEM [TB, H]  CLS-token activations
    w1_ref : VMEM [H, H]   first Linear weight, laid out (in, out)
    b1_ref : VMEM [1, H]   first Linear bias
    w2_ref : VMEM [H, H]   second Linear weight, laid out (in, out)
    b2_ref : VMEM [1, H]   second Linear bias
    o_ref  : VMEM [TB, H]  output
    """
    x = x_ref[...]
    h = jnp.dot(x, w1_ref[...], preferred_element_type=jnp.float32)
    h = jnp.tanh(h + b1_ref[...].astype(jnp.float32))
    y = jnp.dot(h.astype(w2_ref.dtype), w2_ref[...],
                preferred_element_type=jnp.float32)
    o_ref[...] = (y + b2_ref[...].astype(jnp.float32)).astype(o_ref.dtype)


def _pick_batch_tile(B: int) -> int:
    if B <= 128:
        return B
    # >= 2 grid steps so a v7x megacore can shard the "parallel" batch axis
    # across both TensorCores; cap at 256 rows (v6e/v7x MXU native width).
    # v5e (4x128^2 MXU) is equally happy at 128 — the cap only binds for huge B.
    tb = min(256, -(-B // 2))
    return ((tb + 7) // 8) * 8  # sublane-align


def _vmem_limit_bytes(TB: int, H: int, in_dt, w_dt, out_dt) -> int:
    # Worst case: double-buffered weights/biases (fallback path) + double-
    # buffered activation in/out tiles + f32 intermediates, ~30% headroom.
    w_bytes = 2 * (2 * H * H * jnp.dtype(w_dt).itemsize + 2 * H * 4)
    act_bytes = 2 * TB * H * (jnp.dtype(in_dt).itemsize + jnp.dtype(out_dt).itemsize)
    interm_bytes = 2 * TB * H * 4
    need = int(1.3 * (w_bytes + act_bytes + interm_bytes))
    return int(min(max(need, 32 * 2**20), 100 * 2**20))


def _invoke(cls2d, w1, b1_2d, w2, b2_2d, out_dtype, TB, *, fancy):
    B, H = cls2d.shape
    grid = (pl.cdiv(B, TB),)

    # Weights / biases: constant index_map -> grid-resident.  With fancy=True
    # they are single-buffered (they are only DMA'd once, so the second buffer
    # buys nothing and just burns VMEM).
    resident_kwargs = {"pipeline_mode": pl.Buffered(1)} if fancy else {}
    in_specs = [
        pl.BlockSpec((TB, H), lambda i: (i, 0)),                      # CLS rows
        pl.BlockSpec((H, H), lambda i: (0, 0), **resident_kwargs),    # W1
        pl.BlockSpec((1, H), lambda i: (0, 0), **resident_kwargs),    # b1
        pl.BlockSpec((H, H), lambda i: (0, 0), **resident_kwargs),    # W2
        pl.BlockSpec((1, H), lambda i: (0, 0), **resident_kwargs),    # b2
    ]

    cp_kwargs = dict(
        # Every batch tile writes a distinct output block -> parallel
        # (lets v7x shard the grid across its two TensorCores).
        dimension_semantics=("parallel",),
        vmem_limit_bytes=_vmem_limit_bytes(TB, H, cls2d.dtype, w1.dtype, out_dtype),
    )
    if fancy:
        # Under jit, let XLA fuse the encoded[:, 0, :] slice directly into this
        # call's first operand (no materialized [B, H] CLS buffer in HBM).
        cp_kwargs["allow_input_fusion"] = [True, False, False, False, False]

    return pl.pallas_call(
        _cls_encoder_kernel,
        out_shape=jax.ShapeDtypeStruct((B, H), out_dtype),
        grid_spec=pltpu.PrefetchScalarGridSpec(
            num_scalar_prefetch=0,
            grid=grid,
            in_specs=in_specs,
            out_specs=pl.BlockSpec((TB, H), lambda i: (i, 0)),
        ),
        compiler_params=pltpu.CompilerParams(**cp_kwargs),
    )(cls2d, w1, b1_2d, w2, b2_2d)


# Flipped to False (once) if pl.Buffered(1)/allow_input_fusion is not supported
# by the installed jax/Mosaic; the fallback config is the previously verified
# double-buffered one, so the kernel always runs.
_FANCY_OK = True


def cls_encoder(encoded: jax.Array,
                w1: jax.Array, b1: jax.Array,
                w2: jax.Array, b2: jax.Array,
                *, compute_dtype=None) -> jax.Array:
    """encoded: [B, S, H]; w1, w2: [H, H] (in, out); b1, b2: [H] -> [B, H]."""
    global _FANCY_OK
    B, S, H = encoded.shape
    assert w1.shape == (H, H) and w2.shape == (H, H)
    assert b1.shape == (H,) and b2.shape == (H,)

    out_dtype = encoded.dtype

    # Only the CLS token is consumed: O(B*H) HBM reads instead of O(B*S*H).
    # (With allow_input_fusion + jit this slice fuses into the pallas_call.)
    cls = encoded[:, 0, :]
    if compute_dtype is not None:
        # bf16 activations/weights halve HBM traffic + resident VMEM and take
        # the full-rate MXU path on v6e/v7x; accumulation stays f32 in-kernel.
        cls = cls.astype(compute_dtype)
        w1 = w1.astype(compute_dtype)
        w2 = w2.astype(compute_dtype)
    b1_2d = b1.reshape(1, H)
    b2_2d = b2.reshape(1, H)
    # TODO(synk): for production configs where H is not a multiple of 128, pad
    # H to the next multiple of 128 here (lane-sparse last dims force masked
    # partial stores); typical transformer H is already 128-aligned.

    TB = _pick_batch_tile(B)

    if _FANCY_OK:
        try:
            return _invoke(cls, w1, b1_2d, w2, b2_2d, out_dtype, TB, fancy=True)
        except Exception:
            _FANCY_OK = False
    return _invoke(cls, w1, b1_2d, w2, b2_2d, out_dtype, TB, fancy=False)


def cls_encoder_ref(encoded, w1, b1, w2, b2):
    """Pure-JAX reference mirroring the PyTorch forward (eval-mode dropout)."""
    cls = encoded[:, 0, :]
    h = jnp.tanh(cls @ w1 + b1)
    return h @ w2 + b2


if __name__ == "__main__":
    B, S, H = 2, 8, 32  # small shapes consistent with [batch, seq, hidden]

    key = jax.random.PRNGKey(0)
    k_enc, k_w1, k_b1, k_w2, k_b2 = jax.random.split(key, 5)

    encoded = jax.random.normal(k_enc, (B, S, H), dtype=jnp.float32)

    # nn.Linear-style init; weights stored as (in, out) so kernel does x @ W.
    scale = 1.0 / jnp.sqrt(H)
    w1 = jax.random.uniform(k_w1, (H, H), jnp.float32, -scale, scale)
    b1 = jax.random.uniform(k_b1, (H,), jnp.float32, -scale, scale)
    w2 = jax.random.uniform(k_w2, (H, H), jnp.float32, -scale, scale)
    b2 = jax.random.uniform(k_b2, (H,), jnp.float32, -scale, scale)

    ref = cls_encoder_ref(encoded, w1, b1, w2, b2)

    # Full-precision path (exact module semantics).
    out = jax.block_until_ready(cls_encoder(encoded, w1, b1, w2, b2))
    assert out.shape == (B, H), out.shape
    assert jnp.allclose(out, ref, atol=1e-5, rtol=1e-5), (
        f"max abs err {jnp.max(jnp.abs(out - ref))}"
    )

    # bf16 fast path (halved weight DMA / VMEM, full-rate MXU on v6e/v7x);
    # f32 accumulation inside the kernel, so only input/weight rounding differs.
    out_bf16 = jax.block_until_ready(
        cls_encoder(encoded, w1, b1, w2, b2, compute_dtype=jnp.bfloat16))
    assert out_bf16.shape == (B, H), out_bf16.shape
    assert jnp.allclose(out_bf16, ref, atol=1e-1, rtol=1e-1), (
        f"bf16 max abs err {jnp.max(jnp.abs(out_bf16 - ref))}"
    )

    print("KERNEL_OK")
</pallas_src>

<mosaic_0001>
module attributes {stable_mosaic.version = 11 : i64} {
  func.func @_cls_encoder_kernel(%arg0: i32, %arg1: memref<2x32xf32, #tpu.memory_space<vmem>>, %arg2: memref<32x32xf32, #tpu.memory_space<vmem>>, %arg3: memref<1x32xf32, #tpu.memory_space<vmem>>, %arg4: memref<32x32xf32, #tpu.memory_space<vmem>>, %arg5: memref<1x32xf32, #tpu.memory_space<vmem>>, %arg6: memref<2x32xf32, #tpu.memory_space<vmem>>) attributes {dimension_semantics = [#tpu.dimension_semantics<parallel>], iteration_bounds = array<i64: 1>, scalar_prefetch = 0 : i64, scratch_operands = 0 : i64, tpu.core_type = #tpu.core_type<tc>, window_params = [{transform_indices = @transform_0, window_bounds = array<i64: 2, 32>}, {pipeline_mode = #tpu.pipeline_mode<synchronous>, transform_indices = @transform_1, window_bounds = array<i64: 32, 32>}, {pipeline_mode = #tpu.pipeline_mode<synchronous>, transform_indices = @transform_2, window_bounds = array<i64: 1, 32>}, {pipeline_mode = #tpu.pipeline_mode<synchronous>, transform_indices = @transform_3, window_bounds = array<i64: 32, 32>}, {pipeline_mode = #tpu.pipeline_mode<synchronous>, transform_indices = @transform_4, window_bounds = array<i64: 1, 32>}, {transform_indices = @transform_5, window_bounds = array<i64: 2, 32>}]} {
    %c0 = arith.constant 0 : index
    %c0_0 = arith.constant 0 : index
    %0 = vector.load %arg1[%c0, %c0_0] : memref<2x32xf32, #tpu.memory_space<vmem>>, vector<2x32xf32>
    %c0_1 = arith.constant 0 : index
    %c0_2 = arith.constant 0 : index
    %1 = vector.load %arg2[%c0_1, %c0_2] : memref<32x32xf32, #tpu.memory_space<vmem>>, vector<32x32xf32>
    %cst = arith.constant dense<0.000000e+00> : vector<2x32xf32>
    %2 = tpu.matmul %0, %1, %cst {dimension_numbers = #tpu.dot_dimension_numbers<[1], [0], [0], [1], [0, 0, 1, 1], [], []>} : vector<2x32xf32>, vector<32x32xf32>, vector<2x32xf32> -> vector<2x32xf32>
    %c0_3 = arith.constant 0 : index
    %c0_4 = arith.constant 0 : index
    %3 = vector.load %arg3[%c0_3, %c0_4] : memref<1x32xf32, #tpu.memory_space<vmem>>, vector<1x32xf32>
    %4 = vector.broadcast %3 : vector<1x32xf32> to vector<2x32xf32>
    %5 = arith.addf %2, %4 : vector<2x32xf32>
    %6 = math.tanh %5 : vector<2x32xf32>
    %c0_5 = arith.constant 0 : index
    %c0_6 = arith.constant 0 : index
    %7 = vector.load %arg4[%c0_5, %c0_6] : memref<32x32xf32, #tpu.memory_space<vmem>>, vector<32x32xf32>
    %cst_7 = arith.constant dense<0.000000e+00> : vector<2x32xf32>
    %8 = tpu.matmul %6, %7, %cst_7 {dimension_numbers = #tpu.dot_dimension_numbers<[1], [0], [0], [1], [0, 0, 1, 1], [], []>} : vector<2x32xf32>, vector<32x32xf32>, vector<2x32xf32> -> vector<2x32xf32>
    %c0_8 = arith.constant 0 : index
    %c0_9 = arith.constant 0 : index
    %9 = vector.load %arg5[%c0_8, %c0_9] : memref<1x32xf32, #tpu.memory_space<vmem>>, vector<1x32xf32>
    %10 = vector.broadcast %9 : vector<1x32xf32> to vector<2x32xf32>
    %11 = arith.addf %8, %10 : vector<2x32xf32>
    %c0_10 = arith.constant 0 : index
    %c0_11 = arith.constant 0 : index
    %12 = vector.load %arg6[%c0_10, %c0_11] : memref<2x32xf32, #tpu.memory_space<vmem>>, vector<2x32xf32>
    tpu.vector_store %arg6[%c0_10, %c0_11], %11 {strides = array<i32>} : memref<2x32xf32, #tpu.memory_space<vmem>>, vector<2x32xf32>,
    return
  }
  func.func @transform_0(%arg0: i32) -> (i32, i32) {
    %c0_i32 = arith.constant 0 : i32
    %c0_i32_0 = arith.constant 0 : i32
    return %arg0, %c0_i32 : i32, i32
  }
  func.func @transform_1(%arg0: i32) -> (i32, i32) {
    %c0_i32 = arith.constant 0 : i32
    %c0_i32_0 = arith.constant 0 : i32
    %c0_i32_1 = arith.constant 0 : i32
    return %c0_i32, %c0_i32_0 : i32, i32
  }
  func.func @transform_2(%arg0: i32) -> (i32, i32) {
    %c0_i32 = arith.constant 0 : i32
    %c0_i32_0 = arith.constant 0 : i32
    %c0_i32_1 = arith.constant 0 : i32
    return %c0_i32, %c0_i32_0 : i32, i32
  }
  func.func @transform_3(%arg0: i32) -> (i32, i32) {
    %c0_i32 = arith.constant 0 : i32
    %c0_i32_0 = arith.constant 0 : i32
    %c0_i32_1 = arith.constant 0 : i32
    return %c0_i32, %c0_i32_0 : i32, i32
  }
  func.func @transform_4(%arg0: i32) -> (i32, i32) {
    %c0_i32 = arith.constant 0 : i32
    %c0_i32_0 = arith.constant 0 : i32
    %c0_i32_1 = arith.constant 0 : i32
    return %c0_i32, %c0_i32_0 : i32, i32
  }
  func.func @transform_5(%arg0: i32) -> (i32, i32) {
    %c0_i32 = arith.constant 0 : i32
    %c0_i32_0 = arith.constant 0 : i32
    return %arg0, %c0_i32 : i32, i32
  }
}

module attributes {stable_mosaic.version = 11 : i64} {
  func.func @_cls_encoder_kernel(%arg0: i32, %arg1: memref<2x32xf32, #tpu.memory_space<vmem>>, %arg2: memref<32x32xf32, #tpu.memory_space<vmem>>, %arg3: memref<1x32xf32, #tpu.memory_space<vmem>>, %arg4: memref<32x32xf32, #tpu.memory_space<vmem>>, %arg5: memref<1x32xf32, #tpu.memory_space<vmem>>, %arg6: memref<2x32xf32, #tpu.memory_space<vmem>>) attributes {dimension_semantics = [#tpu.dimension_semantics<parallel>], iteration_bounds = array<i64: 1>, scalar_prefetch = 0 : i64, scratch_operands = 0 : i64, tpu.core_type = #tpu.core_type<tc>, window_params = [{transform_indices = @transform_0, window_bounds = array<i64: 2, 32>}, {pipeline_mode = #tpu.pipeline_mode<synchronous>, transform_indices = @transform_1, window_bounds = array<i64: 32, 32>}, {pipeline_mode = #tpu.pipeline_mode<synchronous>, transform_indices = @transform_2, window_bounds = array<i64: 1, 32>}, {pipeline_mode = #tpu.pipeline_mode<synchronous>, transform_indices = @transform_3, window_bounds = array<i64: 32, 32>}, {pipeline_mode = #tpu.pipeline_mode<synchronous>, transform_indices = @transform_4, window_bounds = array<i64: 1, 32>}, {transform_indices = @transform_5, window_bounds = array<i64: 2, 32>}]} {
    %c0 = arith.constant 0 : index
    %c0_0 = arith.constant 0 : index
    %0 = vector.load %arg1[%c0, %c0_0] : memref<2x32xf32, #tpu.memory_space<vmem>>, vector<2x32xf32>
    %c0_1 = arith.constant 0 : index
    %c0_2 = arith.constant 0 : index
    %1 = vector.load %arg2[%c0_1, %c0_2] : memref<32x32xf32, #tpu.memory_space<vmem>>, vector<32x32xf32>
    %cst = arith.constant dense<0.000000e+00> : vector<2x32xf32>
    %2 = tpu.matmul %0, %1, %cst {dimension_numbers = #tpu.dot_dimension_numbers<[1], [0], [0], [1], [0, 0, 1, 1], [], []>} : vector<2x32xf32>, vector<32x32xf32>, vector<2x32xf32> -> vector<2x32xf32>
    %c0_3 = arith.constant 0 : index
    %c0_4 = arith.constant 0 : index
    %3 = vector.load %arg3[%c0_3, %c0_4] : memref<1x32xf32, #tpu.memory_space<vmem>>, vector<1x32xf32>
    %4 = vector.broadcast %3 : vector<1x32xf32> to vector<2x32xf32>
    %5 = arith.addf %2, %4 : vector<2x32xf32>
    %6 = math.tanh %5 : vector<2x32xf32>
    %c0_5 = arith.constant 0 : index
    %c0_6 = arith.constant 0 : index
    %7 = vector.load %arg4[%c0_5, %c0_6] : memref<32x32xf32, #tpu.memory_space<vmem>>, vector<32x32xf32>
    %cst_7 = arith.constant dense<0.000000e+00> : vector<2x32xf32>
    %8 = tpu.matmul %6, %7, %cst_7 {dimension_numbers = #tpu.dot_dimension_numbers<[1], [0], [0], [1], [0, 0, 1, 1], [], []>} : vector<2x32xf32>, vector<32x32xf32>, vector<2x32xf32> -> vector<2x32xf32>
    %c0_8 = arith.constant 0 : index
    %c0_9 = arith.constant 0 : index
    %9 = vector.load %arg5[%c0_8, %c0_9] : memref<1x32xf32, #tpu.memory_space<vmem>>, vector<1x32xf32>
    %10 = vector.broadcast %9 : vector<1x32xf32> to vector<2x32xf32>
    %11 = arith.addf %8, %10 : vector<2x32xf32>
    %c0_10 = arith.constant 0 : index
    %c0_11 = arith.constant 0 : index
    %12 = vector.load %arg6[%c0_10, %c0_11] : memref<2x32xf32, #tpu.memory_space<vmem>>, vector<2x32xf32>
    tpu.vector_store %arg6[%c0_10, %c0_11], %11 {strides = array<i32>} : memref<2x32xf32, #tpu.memory_space<vmem>>, vector<2x32xf32>,
    return
  }
  func.func @transform_0(%arg0: i32) -> (i32, i32) {
    %c0_i32 = arith.constant 0 : i32
    %c0_i32_0 = arith.constant 0 : i32
    return %arg0, %c0_i32 : i32, i32
  }
  func.func @transform_1(%arg0: i32) -> (i32, i32) {
    %c0_i32 = arith.constant 0 : i32
    %c0_i32_0 = arith.constant 0 : i32
    %c0_i32_1 = arith.constant 0 : i32
    return %c0_i32, %c0_i32_0 : i32, i32
  }
  func.func @transform_2(%arg0: i32) -> (i32, i32) {
    %c0_i32 = arith.constant 0 : i32
    %c0_i32_0 = arith.constant 0 : i32
    %c0_i32_1 = arith.constant 0 : i32
    return %c0_i32, %c0_i32_0 : i32, i32
  }
  func.func @transform_3(%arg0: i32) -> (i32, i32) {
    %c0_i32 = arith.constant 0 : i32
    %c0_i32_0 = arith.constant 0 : i32
    %c0_i32_1 = arith.constant 0 : i32
    return %c0_i32, %c0_i32_0 : i32, i32
  }
  func.func @transform_4(%arg0: i32) -> (i32, i32) {
    %c0_i32 = arith.constant 0 : i32
    %c0_i32_0 = arith.constant 0 : i32
    %c0_i32_1 = arith.constant 0 : i32
    return %c0_i32, %c0_i32_0 : i32, i32
  }
  func.func @transform_5(%arg0: i32) -> (i32, i32) {
    %c0_i32 = arith.constant 0 : i32
    %c0_i32_0 = arith.constant 0 : i32
    return %arg0, %c0_i32 : i32, i32
  }
}

</mosaic_0001>

<llo_original>
// kernel: tpu_custom_call.1
$region0: #{tpu_custom_call.1}
  #allocation0 [shape = 'u32[]', space=smem, size = 0x4, offset = 0x4, fixed_abs, tag = 'smem constant byte address 0x4 - core index']
  #allocation1 [shape = 'u32[144,128]{1,0:T(1,128)}', space=vmem, size = 0x12000, scoped, tag = 'internal scratch']
  %s0 = inlined_call_operand.hbm [shape: f32[2,32], index: 0, kind: input, shape index: {}]
  %s1 = inlined_call_operand.hbm [shape: f32[32,32], index: 1, kind: input, shape index: {}]
  %s2 = inlined_call_operand.vmem [shape: f32[1,32], index: 2, kind: input, shape index: {}]
  %s3 = inlined_call_operand.hbm [shape: f32[32,32], index: 3, kind: input, shape index: {}]
  %s4 = inlined_call_operand.vmem [shape: f32[1,32], index: 4, kind: input, shape index: {}]
  %s5 = inlined_call_operand.hbm [shape: f32[2,32], index: 5, kind: output, shape index: {}]
  %s6 = sld [smem:[#allocation0]]
  $region42: #{tpu_custom_call.1} parent=0
    _
  %s8 = ssub.s32 1, %s6
  %s9 = scalar_select 0, %s8, %s6
  $region1: #{tpu_custom_call.1} parent=0
    #allocation2 [shape = 'u8[1024]{0}', space=vmem, size = 0x400, scoped, tag = 'input window, operand 0, single buffered']
    #allocation3 [shape = 's32[1]{0}', space=sflag, size = 0x4, scoped, tag = 'scoped memory for tpu_custom_call.1']
    #allocation4 [shape = 's32[1]{0}', space=sflag, size = 0x4, scoped, tag = 'scoped memory for tpu_custom_call.1']
    #allocation5 [shape = 'u8[16384]{0}', space=vmem, size = 0x4000, scoped, tag = 'input window, operand 1, single buffered']
    #allocation6 [shape = 's32[1]{0}', space=sflag, size = 0x4, scoped, tag = 'scoped memory for tpu_custom_call.1']
    #allocation7 [shape = 'u8[16384]{0}', space=vmem, size = 0x4000, scoped, tag = 'input window, operand 3, single buffered']
    #allocation8 [shape = 'u8[1024]{0}', space=vmem, size = 0x400, scoped, tag = 'output window, operand 0, single buffered']
    %10 = vsyncpa [#allocation3], 0
    %11 = vsyncpa [#allocation6], 0
    %12 = vsyncpa [#allocation4], 0
    // Predicated region
    $region2: #{tpu_custom_call.1} parent=1 // pred_check
      _
    $region3: #{tpu_custom_call.1} parent=1 // pred_check_branch
      %14 = sbr.rel (0) target = $region5
    $region4: #{tpu_custom_call.1} parent=1 // pred_region
      %s16 = ssub.s32 32, 32
      %17 = vsyncadd [#allocation3], %s16
      %s19 = sshll.u32 [#allocation2], 4
      %s20 = int_to_ptr.vmem [resolvable:$true] %s19
      %22 = dma.hbm_to_vmem [thread:$0]  %s0, 32, %s20, [#allocation3]
    $region5: #{tpu_custom_call.1} parent=1 // pred_fallthru
      _
    // Predicated region
    $region6: #{tpu_custom_call.1} parent=1 // pred_check
      _
    $region7: #{tpu_custom_call.1} parent=1 // pred_check_branch
      %24 = sbr.rel (0) target = $region9
    $region8: #{tpu_custom_call.1} parent=1 // pred_region
      %s26 = ssub.s32 512, 512
      %27 = vsyncadd [#allocation6], %s26
      %s28 = sshll.u32 [#allocation5], 4
      %s29 = int_to_ptr.vmem [resolvable:$true] %s28
      %34 = dma.hbm_to_vmem [thread:$0]  %s1, 512, %s29, [#allocation6], 128, 128, 8
    $region9: #{tpu_custom_call.1} parent=1 // pred_fallthru
      _
    // Predicated region
    $region10: #{tpu_custom_call.1} parent=1 // pred_check
      _
    $region11: #{tpu_custom_call.1} parent=1 // pred_check_branch
      %36 = sbr.rel (0) target = $region13
    $region12: #{tpu_custom_call.1} parent=1 // pred_region
      _
    $region13: #{tpu_custom_call.1} parent=1 // pred_fallthru
      _
    // Predicated region
    $region14: #{tpu_custom_call.1} parent=1 // pred_check
      _
    $region15: #{tpu_custom_call.1} parent=1 // pred_check_branch
      %38 = sbr.rel (0) target = $region17
    $region16: #{tpu_custom_call.1} parent=1 // pred_region
      %s40 = ssub.s32 512, 512
      %41 = vsyncadd [#allocation6], %s40
      %s42 = sshll.u32 [#allocation7], 4
      %s43 = int_to_ptr.vmem [resolvable:$true] %s42
      %48 = dma.hbm_to_vmem [thread:$0]  %s3, 512, %s43, [#allocation6], 128, 128, 8
    $region17: #{tpu_custom_call.1} parent=1 // pred_fallthru
      _
    // Predicated region
    $region18: #{tpu_custom_call.1} parent=1 // pred_check
      _
    $region19: #{tpu_custom_call.1} parent=1 // pred_check_branch
      %50 = sbr.rel (0) target = $region21
    $region20: #{tpu_custom_call.1} parent=1 // pred_region
      _
    $region21: #{tpu_custom_call.1} parent=1 // pred_fallthru
      _
    // Predicated region
    $region22: #{tpu_custom_call.1} parent=1 // pred_check
      _
    $region23: #{tpu_custom_call.1} parent=1 // pred_check_branch
      %52 = sbr.rel (0) target = $region25
    $region24: #{tpu_custom_call.1} parent=1 // pred_region
      %53 = dma.done [#allocation3], 32
    $region25: #{tpu_custom_call.1} parent=1 // pred_fallthru
      _
    // Predicated region
    $region26: #{tpu_custom_call.1} parent=1 // pred_check
      _
    $region27: #{tpu_custom_call.1} parent=1 // pred_check_branch
      %55 = sbr.rel (0) target = $region29
    $region28: #{tpu_custom_call.1} parent=1 // pred_region
      %56 = dma.done [#allocation6], 512
    $region29: #{tpu_custom_call.1} parent=1 // pred_fallthru
      _
    // Predicated region
    $region30: #{tpu_custom_call.1} parent=1 // pred_check
      _
    $region31: #{tpu_custom_call.1} parent=1 // pred_check_branch
      %58 = sbr.rel (0) target = $region33
    $region32: #{tpu_custom_call.1} parent=1 // pred_region
      %59 = dma.done [#allocation6], 512
    $region33: #{tpu_custom_call.1} parent=1 // pred_fallthru
      _
    %v60 = vld [vmem:[#allocation2] sm:$0x3]
    %v61 = vld [vmem:[#allocation5] sm:$0xff]
    %v62 = vld [vmem:[#allocation5 + $0x8] sm:$0xff]
    %v63 = vld [vmem:[#allocation5 + $0x10] sm:$0xff]
    %v64 = vld [vmem:[#allocation5 + $0x18] sm:$0xff]
    %v65 = vld [vmem:[%s2] sm:$0x1]
    %v67 = vlaneseq
    %v68 = vshrl.u32 %v67, 7
    %v69 = vsub.s32 0, %v68
    %v70 = vrot.slane %v65, %v69
    %vm72 = vcmask 261120
    %v74 = vsel %vm72, %v60, 0
    %76 = vmatprep.subr.mxu0 0.0
    %77 = vmatpush1.msra.mxu0 %v61
    %78 = vmatprep.subr.mxu0 0.0
    %79 = vmatpush1.msra.mxu0 %v62
    %80 = vmatprep.subr.mxu0 0.0
    %81 = vmatpush1.msra.mxu0 %v63
    %82 = vmatprep.subr.mxu0 0.0
    %83 = vmatpush1.msra.mxu0 %v64
    %84 = vmatprep.subr.mxu0 0.0
    %85 = vmatpush1.msra.mxu0 0.0
    %86 = vmatprep.subr.mxu0 0.0
    %87 = vmatpush1.msra.mxu0 0.0
    %88 = vmatprep.subr.mxu0 0.0
    %89 = vmatpush1.msra.mxu0 0.0
    %90 = vmatprep.subr.mxu0 0.0
    %91 = vmatpush1.msra.mxu0 0.0
    %92 = vmatprep.subr.mxu0 0.0
    %93 = vmatpush1.msra.mxu0 0.0
    %94 = vmatprep.subr.mxu0 0.0
    %95 = vmatpush1.msra.mxu0 0.0
    %96 = vmatprep.subr.mxu0 0.0
    %97 = vmatpush1.msra.mxu0 0.0
    %98 = vmatprep.subr.mxu0 0.0
    %99 = vmatpush1.msra.mxu0 0.0
    %100 = vmatprep.subr.mxu0 0.0
    %101 = vmatpush1.msra.mxu0 0.0
    %102 = vmatprep.subr.mxu0 0.0
    %103 = vmatpush1.msra.mxu0 0.0
    %104 = vmatprep.subr.mxu0 0.0
    %105 = vmatpush1.msra.mxu0 0.0
    %106 = vmatprep.subr.mxu0 0.0
    %107 = vmatpush1.msra.mxu0 0.0
    %108 = vmatprep.subr.mxu0 0.0
    %109 = vmatpush1.msra.mxu0 0.0
    %110 = vmatprep.subr.mxu0 0.0
    %111 = vmatpush1.msra.mxu0 0.0
    %112 = vmatprep.subr.mxu0 0.0
    %113 = vmatpush1.msra.mxu0 0.0
    %114 = vmatprep.subr.mxu0 0.0
    %115 = vmatpush1.msra.mxu0 0.0
    %116 = vmatprep.subr.mxu0 0.0
    %117 = vmatpush1.msra.mxu0 0.0
    %118 = vmatprep.subr.mxu0 0.0
    %119 = vmatpush1.msra.mxu0 0.0
    %120 = vmatprep.subr.mxu0 0.0
    %121 = vmatpush1.msra.mxu0 0.0
    %122 = vmatprep.subr.mxu0 0.0
    %123 = vmatpush1.msra.mxu0 0.0
    %124 = vmatprep.subr.mxu0 0.0
    %125 = vmatpush1.msra.mxu0 0.0
    %126 = vmatprep.subr.mxu0 0.0
    %127 = vmatpush1.msra.mxu0 0.0
    %128 = vmatprep.subr.mxu0 0.0
    %129 = vmatpush1.msra.mxu0 0.0
    %130 = vmatprep.subr.mxu0 0.0
    %131 = vmatpush1.msra.mxu0 0.0
    %132 = vmatprep.subr.mxu0 0.0
    %133 = vmatpush1.msra.mxu0 0.0
    %134 = vmatprep.subr.mxu0 0.0
    %135 = vmatpush1.msra.mxu0 0.0
    %136 = vmatprep.subr.mxu0 0.0
    %137 = vmatpush1.msra.mxu0 0.0
    %138 = vmatprep.subr.mxu0 0.0
    %139 = vmatpush1.msra.mxu0 0.0
    %140 = vmatprep.mubr.f32.mxu0 0.0
    %141 = vmatmul.mubr.f32.gmra.mrb[0].mxu0 %v74
    %v142 = vpop.f32.mrb[0].mxu0
    %v143 = vadd.f32 %v70, %v142
    %v144 = vpop.f32.mrb[0].mxu0
    %145 = vdwg.mxu0
    %v146 = vtanh.pop %v143
    %v147 = vld [vmem:[#allocation7] sm:$0xff]
    %v148 = vld [vmem:[#allocation7 + $0x8] sm:$0xff]
    %v149 = vld [vmem:[#allocation7 + $0x10] sm:$0xff]
    %v150 = vld [vmem:[#allocation7 + $0x18] sm:$0xff]
    %v151 = vld [vmem:[%s4] sm:$0x1]
    %v153 = vlaneseq
    %v154 = vshrl.u32 %v153, 7
    %v155 = vsub.s32 0, %v154
    %v156 = vrot.slane %v151, %v155
    %v159 = vsel %vm72, %v146, 0
    %161 = vmatprep.subr.mxu0 0.0
    %162 = vmatpush1.msra.mxu0 %v147
    %163 = vmatprep.subr.mxu0 0.0
    %164 = vmatpush1.msra.mxu0 %v148
    %165 = vmatprep.subr.mxu0 0.0
    %166 = vmatpush1.msra.mxu0 %v149
    %167 = vmatprep.subr.mxu0 0.0
    %168 = vmatpush1.msra.mxu0 %v150
    %169 = vmatprep.subr.mxu0 0.0
    %170 = vmatpush1.msra.mxu0 0.0
    %171 = vmatprep.subr.mxu0 0.0
    %172 = vmatpush1.msra.mxu0 0.0
    %173 = vmatprep.subr.mxu0 0.0
    %174 = vmatpush1.msra.mxu0 0.0
    %175 = vmatprep.subr.mxu0 0.0
    %176 = vmatpush1.msra.mxu0 0.0
    %177 = vmatprep.subr.mxu0 0.0
    %178 = vmatpush1.msra.mxu0 0.0
    %179 = vmatprep.subr.mxu0 0.0
    %180 = vmatpush1.msra.mxu0 0.0
    %181 = vmatprep.subr.mxu0 0.0
    %182 = vmatpush1.msra.mxu0 0.0
    %183 = vmatprep.subr.mxu0 0.0
    %184 = vmatpush1.msra.mxu0 0.0
    %185 = vmatprep.subr.mxu0 0.0
    %186 = vmatpush1.msra.mxu0 0.0
    %187 = vmatprep.subr.mxu0 0.0
    %188 = vmatpush1.msra.mxu0 0.0
    %189 = vmatprep.subr.mxu0 0.0
    %190 = vmatpush1.msra.mxu0 0.0
    %191 = vmatprep.subr.mxu0 0.0
    %192 = vmatpush1.msra.mxu0 0.0
    %193 = vmatprep.subr.mxu0 0.0
    %194 = vmatpush1.msra.mxu0 0.0
    %195 = vmatprep.subr.mxu0 0.0
    %196 = vmatpush1.msra.mxu0 0.0
    %197 = vmatprep.subr.mxu0 0.0
    %198 = vmatpush1.msra.mxu0 0.0
    %199 = vmatprep.subr.mxu0 0.0
    %200 = vmatpush1.msra.mxu0 0.0
    %201 = vmatprep.subr.mxu0 0.0
    %202 = vmatpush1.msra.mxu0 0.0
    %203 = vmatprep.subr.mxu0 0.0
    %204 = vmatpush1.msra.mxu0 0.0
    %205 = vmatprep.subr.mxu0 0.0
    %206 = vmatpush1.msra.mxu0 0.0
    %207 = vmatprep.subr.mxu0 0.0
    %208 = vmatpush1.msra.mxu0 0.0
    %209 = vmatprep.subr.mxu0 0.0
    %210 = vmatpush1.msra.mxu0 0.0
    %211 = vmatprep.subr.mxu0 0.0
    %212 = vmatpush1.msra.mxu0 0.0
    %213 = vmatprep.subr.mxu0 0.0
    %214 = vmatpush1.msra.mxu0 0.0
    %215 = vmatprep.subr.mxu0 0.0
    %216 = vmatpush1.msra.mxu0 0.0
    %217 = vmatprep.subr.mxu0 0.0
    %218 = vmatpush1.msra.mxu0 0.0
    %219 = vmatprep.subr.mxu0 0.0
    %220 = vmatpush1.msra.mxu0 0.0
    %221 = vmatprep.subr.mxu0 0.0
    %222 = vmatpush1.msra.mxu0 0.0
    %223 = vmatprep.subr.mxu0 0.0
    %224 = vmatpush1.msra.mxu0 0.0
    %225 = vmatprep.mubr.f32.mxu0 0.0
    %226 = vmatmul.mubr.f32.gmra.mrb[0].mxu0 %v159
    %v227 = vpop.f32.mrb[0].mxu0
    %v228 = vadd.f32 %v156, %v227
    %v229 = vpop.f32.mrb[0].mxu0
    %230 = vdwg.mxu0
    %vm231 = vcmask 254976
    %232 = vst.msk [vmem:[#allocation8] sm:$0x3] %vm231, %v228
    // Predicated region
    $region34: #{tpu_custom_call.1} parent=1 // pred_check
      _
    $region35: #{tpu_custom_call.1} parent=1 // pred_check_branch
      %234 = sbr.rel (0) target = $region37
    $region36: #{tpu_custom_call.1} parent=1 // pred_region
      %s236 = ssub.s32 32, 32
      %237 = vsyncadd [#allocation4], %s236
      %s239 = sshll.u32 [#allocation8], 4
      %s240 = int_to_ptr.vmem [resolvable:$true] %s239
      %242 = dma.vmem_to_hbm [thread:$0]  %s240, 32, %s5, [#allocation4]
    $region37: #{tpu_custom_call.1} parent=1 // pred_fallthru
      _
    // Predicated region
    $region38: #{tpu_custom_call.1} parent=1 // pred_check
      _
    $region39: #{tpu_custom_call.1} parent=1 // pred_check_branch
      %244 = sbr.rel (0) target = $region41
    $region40: #{tpu_custom_call.1} parent=1 // pred_region
      %245 = dma.done [#allocation4], 32
    $region41: #{tpu_custom_call.1} parent=1 // pred_fallthru
      _
    %246 = vsyncpa [#allocation3], 1
    %247 = vsyncpa [#allocation6], 1
    %248 = vsyncpa [#allocation4], 1

// kernel: tpu_custom_call.1
$region0: #{tpu_custom_call.1}
  #allocation0 [shape = 'u32[]', space=smem, size = 0x4, offset = 0x4, fixed_abs, tag = 'smem constant byte address 0x4 - core index']
  #allocation1 [shape = 'u32[144,128]{1,0:T(1,128)}', space=vmem, size = 0x12000, scoped, tag = 'internal scratch']
  %s0 = inlined_call_operand.hbm [shape: f32[2,32], index: 0, kind: input, shape index: {}]
  %s1 = inlined_call_operand.hbm [shape: f32[32,32], index: 1, kind: input, shape index: {}]
  %s2 = inlined_call_operand.vmem [shape: f32[1,32], index: 2, kind: input, shape index: {}]
  %s3 = inlined_call_operand.hbm [shape: f32[32,32], index: 3, kind: input, shape index: {}]
  %s4 = inlined_call_operand.vmem [shape: f32[1,32], index: 4, kind: input, shape index: {}]
  %s5 = inlined_call_operand.hbm [shape: f32[2,32], index: 5, kind: output, shape index: {}]
  %s6 = sld [smem:[#allocation0]]
  $region42: #{tpu_custom_call.1} parent=0
    _
  %s8 = ssub.s32 1, %s6
  %s9 = scalar_select 0, %s8, %s6
  $region1: #{tpu_custom_call.1} parent=0
    #allocation2 [shape = 'u8[1024]{0}', space=vmem, size = 0x400, scoped, tag = 'input window, operand 0, single buffered']
    #allocation3 [shape = 's32[1]{0}', space=sflag, size = 0x4, scoped, tag = 'scoped memory for tpu_custom_call.1']
    #allocation4 [shape = 's32[1]{0}', space=sflag, size = 0x4, scoped, tag = 'scoped memory for tpu_custom_call.1']
    #allocation5 [shape = 'u8[16384]{0}', space=vmem, size = 0x4000, scoped, tag = 'input window, operand 1, single buffered']
    #allocation6 [shape = 's32[1]{0}', space=sflag, size = 0x4, scoped, tag = 'scoped memory for tpu_custom_call.1']
    #allocation7 [shape = 'u8[16384]{0}', space=vmem, size = 0x4000, scoped, tag = 'input window, operand 3, single buffered']
    #allocation8 [shape = 'u8[1024]{0}', space=vmem, size = 0x400, scoped, tag = 'output window, operand 0, single buffered']
    %10 = vsyncpa [#allocation3], 0
    %11 = vsyncpa [#allocation6], 0
    %12 = vsyncpa [#allocation4], 0
    // Predicated region
    $region2: #{tpu_custom_call.1} parent=1 // pred_check
      _
    $region3: #{tpu_custom_call.1} parent=1 // pred_check_branch
      %14 = sbr.rel (0) target = $region5
    $region4: #{tpu_custom_call.1} parent=1 // pred_region
      %s16 = ssub.s32 32, 32
      %17 = vsyncadd [#allocation3], %s16
      %s19 = sshll.u32 [#allocation2], 4
      %s20 = int_to_ptr.vmem [resolvable:$true] %s19
      %22 = dma.hbm_to_vmem [thread:$0]  %s0, 32, %s20, [#allocation3]
    $region5: #{tpu_custom_call.1} parent=1 // pred_fallthru
      _
    // Predicated region
    $region6: #{tpu_custom_call.1} parent=1 // pred_check
      _
    $region7: #{tpu_custom_call.1} parent=1 // pred_check_branch
      %24 = sbr.rel (0) target = $region9
    $region8: #{tpu_custom_call.1} parent=1 // pred_region
      %s26 = ssub.s32 512, 512
      %27 = vsyncadd [#allocation6], %s26
      %s28 = sshll.u32 [#allocation5], 4
      %s29 = int_to_ptr.vmem [resolvable:$true] %s28
      %34 = dma.hbm_to_vmem [thread:$0]  %s1, 512, %s29, [#allocation6], 128, 128, 8
    $region9: #{tpu_custom_call.1} parent=1 // pred_fallthru
      _
    // Predicated region
    $region10: #{tpu_custom_call.1} parent=1 // pred_check
      _
    $region11: #{tpu_custom_call.1} parent=1 // pred_check_branch
      %36 = sbr.rel (0) target = $region13
    $region12: #{tpu_custom_call.1} parent=1 // pred_region
      _
    $region13: #{tpu_custom_call.1} parent=1 // pred_fallthru
      _
    // Predicated region
    $region14: #{tpu_custom_call.1} parent=1 // pred_check
      _
    $region15: #{tpu_custom_call.1} parent=1 // pred_check_branch
      %38 = sbr.rel (0) target = $region17
    $region16: #{tpu_custom_call.1} parent=1 // pred_region
      %s40 = ssub.s32 512, 512
      %41 = vsyncadd [#allocation6], %s40
      %s42 = sshll.u32 [#allocation7], 4
      %s43 = int_to_ptr.vmem [resolvable:$true] %s42
      %48 = dma.hbm_to_vmem [thread:$0]  %s3, 512, %s43, [#allocation6], 128, 128, 8
    $region17: #{tpu_custom_call.1} parent=1 // pred_fallthru
      _
    // Predicated region
    $region18: #{tpu_custom_call.1} parent=1 // pred_check
      _
    $region19: #{tpu_custom_call.1} parent=1 // pred_check_branch
      %50 = sbr.rel (0) target = $region21
    $region20: #{tpu_custom_call.1} parent=1 // pred_region
      _
    $region21: #{tpu_custom_call.1} parent=1 // pred_fallthru
      _
    // Predicated region
    $region22: #{tpu_custom_call.1} parent=1 // pred_check
      _
    $region23: #{tpu_custom_call.1} parent=1 // pred_check_branch
      %52 = sbr.rel (0) target = $region25
    $region24: #{tpu_custom_call.1} parent=1 // pred_region
      %53 = dma.done [#allocation3], 32
    $region25: #{tpu_custom_call.1} parent=1 // pred_fallthru
      _
    // Predicated region
    $region26: #{tpu_custom_call.1} parent=1 // pred_check
      _
    $region27: #{tpu_custom_call.1} parent=1 // pred_check_branch
      %55 = sbr.rel (0) target = $region29
    $region28: #{tpu_custom_call.1} parent=1 // pred_region
      %56 = dma.done [#allocation6], 512
    $region29: #{tpu_custom_call.1} parent=1 // pred_fallthru
      _
    // Predicated region
    $region30: #{tpu_custom_call.1} parent=1 // pred_check
      _
    $region31: #{tpu_custom_call.1} parent=1 // pred_check_branch
      %58 = sbr.rel (0) target = $region33
    $region32: #{tpu_custom_call.1} parent=1 // pred_region
      %59 = dma.done [#allocation6], 512
    $region33: #{tpu_custom_call.1} parent=1 // pred_fallthru
      _
    %v60 = vld [vmem:[#allocation2] sm:$0x3]
    %v61 = vld [vmem:[#allocation5] sm:$0xff]
    %v62 = vld [vmem:[#allocation5 + $0x8] sm:$0xff]
    %v63 = vld [vmem:[#allocation5 + $0x10] sm:$0xff]
    %v64 = vld [vmem:[#allocation5 + $0x18] sm:$0xff]
    %v65 = vld [vmem:[%s2] sm:$0x1]
    %v67 = vlaneseq
    %v68 = vshrl.u32 %v67, 7
    %v69 = vsub.s32 0, %v68
    %v70 = vrot.slane %v65, %v69
    %vm72 = vcmask 261120
    %v74 = vsel %vm72, %v60, 0
    %76 = vmatprep.subr.mxu0 0.0
    %77 = vmatpush1.msra.mxu0 %v61
    %78 = vmatprep.subr.mxu0 0.0
    %79 = vmatpush1.msra.mxu0 %v62
    %80 = vmatprep.subr.mxu0 0.0
    %81 = vmatpush1.msra.mxu0 %v63
    %82 = vmatprep.subr.mxu0 0.0
    %83 = vmatpush1.msra.mxu0 %v64
    %84 = vmatprep.subr.mxu0 0.0
    %85 = vmatpush1.msra.mxu0 0.0
    %86 = vmatprep.subr.mxu0 0.0
    %87 = vmatpush1.msra.mxu0 0.0
    %88 = vmatprep.subr.mxu0 0.0
    %89 = vmatpush1.msra.mxu0 0.0
    %90 = vmatprep.subr.mxu0 0.0
    %91 = vmatpush1.msra.mxu0 0.0
    %92 = vmatprep.subr.mxu0 0.0
    %93 = vmatpush1.msra.mxu0 0.0
    %94 = vmatprep.subr.mxu0 0.0
    %95 = vmatpush1.msra.mxu0 0.0
    %96 = vmatprep.subr.mxu0 0.0
    %97 = vmatpush1.msra.mxu0 0.0
    %98 = vmatprep.subr.mxu0 0.0
    %99 = vmatpush1.msra.mxu0 0.0
    %100 = vmatprep.subr.mxu0 0.0
    %101 = vmatpush1.msra.mxu0 0.0
    %102 = vmatprep.subr.mxu0 0.0
    %103 = vmatpush1.msra.mxu0 0.0
    %104 = vmatprep.subr.mxu0 0.0
    %105 = vmatpush1.msra.mxu0 0.0
    %106 = vmatprep.subr.mxu0 0.0
    %107 = vmatpush1.msra.mxu0 0.0
    %108 = vmatprep.subr.mxu0 0.0
    %109 = vmatpush1.msra.mxu0 0.0
    %110 = vmatprep.subr.mxu0 0.0
    %111 = vmatpush1.msra.mxu0 0.0
    %112 = vmatprep.subr.mxu0 0.0
    %113 = vmatpush1.msra.mxu0 0.0
    %114 = vmatprep.subr.mxu0 0.0
    %115 = vmatpush1.msra.mxu0 0.0
    %116 = vmatprep.subr.mxu0 0.0
    %117 = vmatpush1.msra.mxu0 0.0
    %118 = vmatprep.subr.mxu0 0.0
    %119 = vmatpush1.msra.mxu0 0.0
    %120 = vmatprep.subr.mxu0 0.0
    %121 = vmatpush1.msra.mxu0 0.0
    %122 = vmatprep.subr.mxu0 0.0
    %123 = vmatpush1.msra.mxu0 0.0
    %124 = vmatprep.subr.mxu0 0.0
    %125 = vmatpush1.msra.mxu0 0.0
    %126 = vmatprep.subr.mxu0 0.0
    %127 = vmatpush1.msra.mxu0 0.0
    %128 = vmatprep.subr.mxu0 0.0
    %129 = vmatpush1.msra.mxu0 0.0
    %130 = vmatprep.subr.mxu0 0.0
    %131 = vmatpush1.msra.mxu0 0.0
    %132 = vmatprep.subr.mxu0 0.0
    %133 = vmatpush1.msra.mxu0 0.0
    %134 = vmatprep.subr.mxu0 0.0
    %135 = vmatpush1.msra.mxu0 0.0
    %136 = vmatprep.subr.mxu0 0.0
    %137 = vmatpush1.msra.mxu0 0.0
    %138 = vmatprep.subr.mxu0 0.0
    %139 = vmatpush1.msra.mxu0 0.0
    %140 = vmatprep.mubr.f32.mxu0 0.0
    %141 = vmatmul.mubr.f32.gmra.mrb[0].mxu0 %v74
    %v142 = vpop.f32.mrb[0].mxu0
    %v143 = vadd.f32 %v70, %v142
    %v144 = vpop.f32.mrb[0].mxu0
    %145 = vdwg.mxu0
    %v146 = vtanh.pop %v143
    %v147 = vld [vmem:[#allocation7] sm:$0xff]
    %v148 = vld [vmem:[#allocation7 + $0x8] sm:$0xff]
    %v149 = vld [vmem:[#allocation7 + $0x10] sm:$0xff]
    %v150 = vld [vmem:[#allocation7 + $0x18] sm:$0xff]
    %v151 = vld [vmem:[%s4] sm:$0x1]
    %v153 = vlaneseq
    %v154 = vshrl.u32 %v153, 7
    %v155 = vsub.s32 0, %v154
    %v156 = vrot.slane %v151, %v155
    %v159 = vsel %vm72, %v146, 0
    %161 = vmatprep.subr.mxu0 0.0
    %162 = vmatpush1.msra.mxu0 %v147
    %163 = vmatprep.subr.mxu0 0.0
    %164 = vmatpush1.msra.mxu0 %v148
    %165 = vmatprep.subr.mxu0 0.0
    %166 = vmatpush1.msra.mxu0 %v149
    %167 = vmatprep.subr.mxu0 0.0
    %168 = vmatpush1.msra.mxu0 %v150
    %169 = vmatprep.subr.mxu0 0.0
    %170 = vmatpush1.msra.mxu0 0.0
    %171 = vmatprep.subr.mxu0 0.0
    %172 = vmatpush1.msra.mxu0 0.0
    %173 = vmatprep.subr.mxu0 0.0
    %174 = vmatpush1.msra.mxu0 0.0
    %175 = vmatprep.subr.mxu0 0.0
    %176 = vmatpush1.msra.mxu0 0.0
    %177 = vmatprep.subr.mxu0 0.0
    %178 = vmatpush1.msra.mxu0 0.0
    %179 = vmatprep.subr.mxu0 0.0
    %180 = vmatpush1.msra.mxu0 0.0
    %181 = vmatprep.subr.mxu0 0.0
    %182 = vmatpush1.msra.mxu0 0.0
    %183 = vmatprep.subr.mxu0 0.0
    %184 = vmatpush1.msra.mxu0 0.0
    %185 = vmatprep.subr.mxu0 0.0
    %186 = vmatpush1.msra.mxu0 0.0
    %187 = vmatprep.subr.mxu0 0.0
    %188 = vmatpush1.msra.mxu0 0.0
    %189 = vmatprep.subr.mxu0 0.0
    %190 = vmatpush1.msra.mxu0 0.0
    %191 = vmatprep.subr.mxu0 0.0
    %192 = vmatpush1.msra.mxu0 0.0
    %193 = vmatprep.subr.mxu0 0.0
    %194 = vmatpush1.msra.mxu0 0.0
    %195 = vmatprep.subr.mxu0 0.0
    %196 = vmatpush1.msra.mxu0 0.0
    %197 = vmatprep.subr.mxu0 0.0
    %198 = vmatpush1.msra.mxu0 0.0
    %199 = vmatprep.subr.mxu0 0.0
    %200 = vmatpush1.msra.mxu0 0.0
    %201 = vmatprep.subr.mxu0 0.0
    %202 = vmatpush1.msra.mxu0 0.0
    %203 = vmatprep.subr.mxu0 0.0
    %204 = vmatpush1.msra.mxu0 0.0
    %205 = vmatprep.subr.mxu0 0.0
    %206 = vmatpush1.msra.mxu0 0.0
    %207 = vmatprep.subr.mxu0 0.0
    %208 = vmatpush1.msra.mxu0 0.0
    %209 = vmatprep.subr.mxu0 0.0
    %210 = vmatpush1.msra.mxu0 0.0
    %211 = vmatprep.subr.mxu0 0.0
    %212 = vmatpush1.msra.mxu0 0.0
    %213 = vmatprep.subr.mxu0 0.0
    %214 = vmatpush1.msra.mxu0 0.0
    %215 = vmatprep.subr.mxu0 0.0
    %216 = vmatpush1.msra.mxu0 0.0
    %217 = vmatprep.subr.mxu0 0.0
    %218 = vmatpush1.msra.mxu0 0.0
    %219 = vmatprep.subr.mxu0 0.0
    %220 = vmatpush1.msra.mxu0 0.0
    %221 = vmatprep.subr.mxu0 0.0
    %222 = vmatpush1.msra.mxu0 0.0
    %223 = vmatprep.subr.mxu0 0.0
    %224 = vmatpush1.msra.mxu0 0.0
    %225 = vmatprep.mubr.f32.mxu0 0.0
    %226 = vmatmul.mubr.f32.gmra.mrb[0].mxu0 %v159
    %v227 = vpop.f32.mrb[0].mxu0
    %v228 = vadd.f32 %v156, %v227
    %v229 = vpop.f32.mrb[0].mxu0
    %230 = vdwg.mxu0
    %vm231 = vcmask 254976
    %232 = vst.msk [vmem:[#allocation8] sm:$0x3] %vm231, %v228
    // Predicated region
    $region34: #{tpu_custom_call.1} parent=1 // pred_check
      _
    $region35: #{tpu_custom_call.1} parent=1 // pred_check_branch
      %234 = sbr.rel (0) target = $region37
    $region36: #{tpu_custom_call.1} parent=1 // pred_region
      %s236 = ssub.s32 32, 32
      %237 = vsyncadd [#allocation4], %s236
      %s239 = sshll.u32 [#allocation8], 4
      %s240 = int_to_ptr.vmem [resolvable:$true] %s239
      %242 = dma.vmem_to_hbm [thread:$0]  %s240, 32, %s5, [#allocation4]
    $region37: #{tpu_custom_call.1} parent=1 // pred_fallthru
      _
    // Predicated region
    $region38: #{tpu_custom_call.1} parent=1 // pred_check
      _
    $region39: #{tpu_custom_call.1} parent=1 // pred_check_branch
      %244 = sbr.rel (0) target = $region41
    $region40: #{tpu_custom_call.1} parent=1 // pred_region
      %245 = dma.done [#allocation4], 32
    $region41: #{tpu_custom_call.1} parent=1 // pred_fallthru
      _
    %246 = vsyncpa [#allocation3], 1
    %247 = vsyncpa [#allocation6], 1
    %248 = vsyncpa [#allocation4], 1

</llo_original>
